<compile_context>
chip_gen: v7x
topology: tpu7x:2x2x1
jax: 0.10.0
libtpu: 0.0.40
codegen_flags: <defaults>
</compile_context>

<pallas_src>
import math
from functools import partial

import jax
import jax.numpy as jnp
from jax import lax
from jax.experimental import pallas as pl
from jax.experimental.pallas import tpu as pltpu


def _round_up(x, m):
    return ((x + m - 1) // m) * m


# --------------------------------------------------------------------------
# Kernels
# --------------------------------------------------------------------------
def _epilogue(acc_f32, shift_row, gelu, out_dtype):
    y = acc_f32 + shift_row                       # (1, TN) broadcasts
    if gelu:
        # nn.GELU() default is the exact erf form; epilogue stays in f32.
        y = 0.5 * y * (1.0 + lax.erf(y * jnp.float32(0.7071067811865475)))
    else:
        y = jnp.maximum(y, 0.0)                   # nn.ReLU()
    return y.astype(out_dtype)


def _gemm_bias_act_kernel(a_ref, w_ref, shift_ref, o_ref, *, gelu):
    """Single-K-step tile:  o = act(A @ W + shift)."""
    acc = jnp.dot(a_ref[...], w_ref[...], preferred_element_type=jnp.float32)
    o_ref[...] = _epilogue(acc, shift_ref[...], gelu, o_ref.dtype)


def _gemm_bias_act_kernel_ktiled(a_ref, w_ref, shift_ref, o_ref, acc_ref, *,
                                 gelu):
    """K-tiled tile: accumulate into f32 scratch, epilogue on last K step."""
    k = pl.program_id(2)

    @pl.when(k == 0)
    def _():
        acc_ref[...] = jnp.zeros_like(acc_ref)

    acc_ref[...] += jnp.dot(a_ref[...], w_ref[...],
                            preferred_element_type=jnp.float32)

    @pl.when(k == pl.num_programs(2) - 1)
    def _():
        o_ref[...] = _epilogue(acc_ref[...], shift_ref[...], gelu, o_ref.dtype)


# --------------------------------------------------------------------------
# Generation / VMEM aware tile selection
# --------------------------------------------------------------------------
def _device_kind():
    try:
        return jax.devices()[0].device_kind.lower()
    except Exception:
        return ""


def _vmem_capacity_bytes(kind):
    try:
        info = pltpu.get_tpu_info()
        cap = int(getattr(info, "vmem_capacity_bytes", 0) or 0)
        if cap > 0:
            return cap
    except Exception:
        pass
    # Fallback by generation: v7x has 64 MiB per TensorCore, older chips 128.
    return (64 if "v7" in kind else 128) * 1024 * 1024


def _choose_tiles(M, K, Cout, mxu_dtype, k_tile_cap):
    """Tile sizes + VMEM limit for the (M, K) x (K, N) GEMM."""
    itemsize = jnp.dtype(mxu_dtype).itemsize
    sub = {4: 8, 2: 16, 1: 32}.get(itemsize, 8)   # sublane quantum

    kind = _device_kind()
    is_v5 = "v5" in kind
    vmem_cap = _vmem_capacity_bytes(kind)
    budget = int(vmem_cap * 0.45)                 # headroom for compiler temps

    # N tile: 256-wide MXU passes on v6e/v7x when Cout allows; 128 on v5e
    # (4x128^2 MXU) and for small Cout.  Output stays lane-dense either way.
    np128 = _round_up(Cout, 128)
    TN = 256 if (not is_v5 and np128 >= 256 and np128 % 256 == 0) else 128
    Np = _round_up(Cout, TN)

    # K: whole-K block when small (pad only to the sublane quantum, not 128);
    # otherwise 128-aligned K tiles + in-kernel f32 accumulation.
    if K <= k_tile_cap:
        TK = _round_up(K, sub)
        Kp = TK
    else:
        TK = _round_up(min(k_tile_cap, 1024), 128)
        Kp = _round_up(K, TK)

    # M tile: as big as the budget allows (fewer grid steps, bigger DMAs).
    TM = min(1024 if is_v5 else 512, _round_up(M, 8))

    def footprint(tm, tn, tk):
        buf = 2 * (tm * tk + tk * tn) * itemsize  # A + W, double-buffered
        buf += 2 * tn * 4                         # shift row
        buf += 2 * tm * tn * 4                    # output, double-buffered
        buf += tm * tn * 4                        # f32 accumulator scratch
        return buf

    while TM > 64 and footprint(TM, TN, TK) > budget:
        TM = max(64, _round_up(TM // 2, 8))
    while TN > 128 and footprint(TM, TN, TK) > budget:
        TN //= 2
        Np = _round_up(Cout, TN)
    while TK > 512 and footprint(TM, TN, TK) > budget:
        TK = _round_up(TK // 2, 128)
        Kp = _round_up(K, TK)

    # Keep >= 2 parallel grid steps so both v7x TensorCores get work.
    if (_round_up(M, TM) // TM) * (Np // TN) < 2 and M >= 256:
        TM = _round_up(-(-M // 2), 8)

    Mp = _round_up(M, TM)
    vlim = int(min(vmem_cap * 0.85,
                   max(32 * 1024 * 1024,
                       2 * footprint(TM, TN, TK) + (8 << 20))))
    return TM, TN, TK, Mp, Np, Kp, vlim


# --------------------------------------------------------------------------
# Wrapper
# --------------------------------------------------------------------------
def conv_block_forward(x, weight_oihw, bias, *, stride=1, padding=0,
                       padding_mode="zeros", bn_params=None, gelu=False,
                       mxu_dtype=jnp.bfloat16, out_dtype=None,
                       nhwc_in=False, nhwc_out=False, k_tile_cap=2048):
    """Pallas implementation of ConvBlock.forward.

    x: NCHW (PyTorch layout) unless nhwc_in=True.
    bn_params: None or (gamma, beta, running_mean, running_var, eps).
      BatchNorm is eval-mode (running stats folded into weights/shift).
    mxu_dtype: dtype fed to the MXU (bf16 default, f32 accumulation always).
      Pass jnp.float32 for exact f32 parity with PyTorch.
    out_dtype / nhwc_out: use bf16 / NHWC when chaining ConvBlocks to skip the
      f32 writeback and the NCHW transpose; defaults match PyTorch (f32, NCHW).
    """
    # TODO(synk): training-mode BatchNorm (batch statistics) not implemented.
    out_dtype = jnp.float32 if out_dtype is None else out_dtype

    if nhwc_in:
        B, H, W, Cin = x.shape
        xh = x
    else:
        B, Cin, H, W = x.shape
        xh = jnp.transpose(x, (0, 2, 3, 1))                 # NCHW -> NHWC
    Cout, Cin_w, KH, KW = weight_oihw.shape
    assert Cin_w == Cin

    # Cast activations to the MXU dtype *before* im2col so the patch matrix is
    # built (and round-tripped through HBM) once at MXU precision, not f32.
    xh = xh.astype(mxu_dtype)

    if padding > 0:
        mode = {"zeros": "constant", "reflect": "reflect",
                "replicate": "edge", "circular": "wrap"}[padding_mode]
        xh = jnp.pad(xh, ((0, 0), (padding, padding),
                          (padding, padding), (0, 0)), mode=mode)
    Hp, Wp = xh.shape[1], xh.shape[2]
    Ho = (Hp - KH) // stride + 1
    Wo = (Wp - KW) // stride + 1

    # ---- fold conv bias + eval-mode BN into per-channel scale / shift ------
    w = jnp.transpose(weight_oihw, (2, 3, 1, 0)).astype(jnp.float32)  # HWIO
    b = (bias if bias is not None else jnp.zeros((Cout,))).astype(jnp.float32)
    if bn_params is not None:
        gamma, beta, mean, var, eps = bn_params
        s = gamma.astype(jnp.float32) / jnp.sqrt(var.astype(jnp.float32) + eps)
        w = w * s.reshape(1, 1, 1, Cout)
        shift = (b - mean.astype(jnp.float32)) * s + beta.astype(jnp.float32)
    else:
        shift = b

    # ---- im2col in plain JAX (already in MXU dtype); kernel sees one GEMM --
    # TODO(synk): fully fused in-kernel im2col (per-tap DMA) would remove the
    # remaining A round trip through HBM; not implemented for general stride.
    taps = []
    for kh in range(KH):
        for kw in range(KW):
            taps.append(xh[:, kh:kh + (Ho - 1) * stride + 1:stride,
                               kw:kw + (Wo - 1) * stride + 1:stride, :])
    a = jnp.concatenate(taps, axis=-1).reshape(B * Ho * Wo, KH * KW * Cin)
    wmat = w.reshape(KH * KW * Cin, Cout)

    M, K = a.shape
    TM, TN, TK, Mp, Np, Kp, vlim = _choose_tiles(M, K, Cout, mxu_dtype,
                                                 k_tile_cap)

    a = jnp.pad(a, ((0, Mp - M), (0, Kp - K)))
    wmat = jnp.pad(wmat, ((0, Kp - K), (0, Np - Cout))).astype(mxu_dtype)
    shift_row = jnp.pad(shift, (0, Np - Cout)).reshape(1, Np)

    n_k = Kp // TK
    if n_k == 1:
        kernel = partial(_gemm_bias_act_kernel, gelu=gelu)
        grid = (Mp // TM, Np // TN)
        in_specs = [pl.BlockSpec((TM, TK), lambda i, j: (i, 0)),
                    pl.BlockSpec((TK, TN), lambda i, j: (0, j)),
                    pl.BlockSpec((1, TN), lambda i, j: (0, j))]
        out_specs = pl.BlockSpec((TM, TN), lambda i, j: (i, j))
        scratch = ()
        sem = ("parallel", "parallel")
    else:
        kernel = partial(_gemm_bias_act_kernel_ktiled, gelu=gelu)
        grid = (Mp // TM, Np // TN, n_k)
        in_specs = [pl.BlockSpec((TM, TK), lambda i, j, k: (i, k)),
                    pl.BlockSpec((TK, TN), lambda i, j, k: (k, j)),
                    pl.BlockSpec((1, TN), lambda i, j, k: (0, j))]
        out_specs = pl.BlockSpec((TM, TN), lambda i, j, k: (i, j))
        scratch = (pltpu.VMEM((TM, TN), jnp.float32),)
        sem = ("parallel", "parallel", "arbitrary")

    out = pl.pallas_call(
        kernel,
        out_shape=jax.ShapeDtypeStruct((Mp, Np), out_dtype),
        grid_spec=pltpu.PrefetchScalarGridSpec(
            num_scalar_prefetch=0, grid=grid,
            in_specs=in_specs, out_specs=out_specs, scratch_shapes=scratch),
        compiler_params=pltpu.CompilerParams(
            dimension_semantics=sem, vmem_limit_bytes=vlim),
    )(a, wmat, shift_row)

    out = out[:M, :Cout].reshape(B, Ho, Wo, Cout)
    if not nhwc_out:
        out = jnp.transpose(out, (0, 3, 1, 2))               # back to NCHW
    return out


# --------------------------------------------------------------------------
# Pure-JAX reference mirroring the PyTorch forward (zeros padding)
# --------------------------------------------------------------------------
def _reference(x, w, b, *, stride, padding, bn_params, gelu):
    y = lax.conv_general_dilated(
        x, w, (stride, stride), [(padding, padding), (padding, padding)],
        dimension_numbers=("NCHW", "OIHW", "NCHW"))
    y = y + b.reshape(1, -1, 1, 1)
    if bn_params is not None:
        gamma, beta, mean, var, eps = bn_params
        y = ((y - mean.reshape(1, -1, 1, 1))
             / jnp.sqrt(var.reshape(1, -1, 1, 1) + eps)
             * gamma.reshape(1, -1, 1, 1) + beta.reshape(1, -1, 1, 1))
    if gelu:
        y = 0.5 * y * (1.0 + lax.erf(y / jnp.sqrt(jnp.float32(2.0))))
    else:
        y = jnp.maximum(y, 0.0)
    return y


if __name__ == "__main__":
    B, Cin, Cout, H, W, Ksz = 2, 4, 8, 16, 16, 3

    key = jax.random.PRNGKey(0)
    kx, kw, kb, kw2, kb2 = jax.random.split(key, 5)

    x = jax.random.normal(kx, (B, Cin, H, W), dtype=jnp.float32)

    fan_in = Cin * Ksz * Ksz
    bound = 1.0 / math.sqrt(fan_in)
    weight = jax.random.uniform(kw, (Cout, Cin, Ksz, Ksz),
                                minval=-bound, maxval=bound, dtype=jnp.float32)
    bias = jax.random.uniform(kb, (Cout,),
                              minval=-bound, maxval=bound, dtype=jnp.float32)

    # --- Config 1: module defaults (bias, no BN, ReLU); f32 MXU, tight tol ---
    out1 = conv_block_forward(x, weight, bias, stride=1, padding=0,
                              bn_params=None, gelu=False,
                              mxu_dtype=jnp.float32)
    out1 = jax.block_until_ready(out1)
    ref1 = _reference(x, weight, bias, stride=1, padding=0,
                      bn_params=None, gelu=False)
    assert out1.shape == (B, Cout, H - Ksz + 1, W - Ksz + 1)
    assert jnp.allclose(out1, ref1, atol=1e-4, rtol=1e-4)

    # --- Config 2: bn=True, gelu=True; default bf16 MXU inputs, f32 accum ---
    gamma = jnp.ones((Cout,), jnp.float32)
    beta = jnp.zeros((Cout,), jnp.float32)
    running_mean = jnp.zeros((Cout,), jnp.float32)
    running_var = jnp.ones((Cout,), jnp.float32)
    bn_params = (gamma, beta, running_mean, running_var, 1e-5)

    out2 = conv_block_forward(x, weight, bias, stride=1, padding=0,
                              bn_params=bn_params, gelu=True)
    out2 = jax.block_until_ready(out2)
    ref2 = _reference(x, weight, bias, stride=1, padding=0,
                      bn_params=bn_params, gelu=True)
    assert jnp.allclose(out2, ref2, atol=5e-2, rtol=5e-2)

    # --- Config 3: stride=2, padding=1 (zeros) exercises strided im2col ---
    out3 = conv_block_forward(x, weight, bias, stride=2, padding=1,
                              bn_params=None, gelu=False,
                              mxu_dtype=jnp.float32)
    out3 = jax.block_until_ready(out3)
    ref3 = _reference(x, weight, bias, stride=2, padding=1,
                      bn_params=None, gelu=False)
    assert out3.shape == ref3.shape
    assert jnp.allclose(out3, ref3, atol=1e-4, rtol=1e-4)

    # --- Config 4: larger Cin + forced K-tiling exercises the accumulator ---
    Cin2, Cout2 = 32, 16
    fan_in2 = Cin2 * Ksz * Ksz
    bound2 = 1.0 / math.sqrt(fan_in2)
    x2 = jax.random.normal(kx, (B, Cin2, H, W), dtype=jnp.float32)
    weight2 = jax.random.uniform(kw2, (Cout2, Cin2, Ksz, Ksz),
                                 minval=-bound2, maxval=bound2,
                                 dtype=jnp.float32)
    bias2 = jax.random.uniform(kb2, (Cout2,),
                               minval=-bound2, maxval=bound2,
                               dtype=jnp.float32)
    out4 = conv_block_forward(x2, weight2, bias2, stride=1, padding=1,
                              bn_params=None, gelu=False,
                              mxu_dtype=jnp.float32, k_tile_cap=128)
    out4 = jax.block_until_ready(out4)
    ref4 = _reference(x2, weight2, bias2, stride=1, padding=1,
                      bn_params=None, gelu=False)
    assert out4.shape == ref4.shape
    assert jnp.allclose(out4, ref4, atol=1e-4, rtol=1e-4)

    print("KERNEL_OK")
</pallas_src>

<mosaic_0001>
module attributes {stable_mosaic.version = 11 : i64} {
  func.func @_gemm_bias_act_kernel(%arg0: i32, %arg1: i32, %arg2: memref<200x40xf32, #tpu.memory_space<vmem>>, %arg3: memref<40x128xf32, #tpu.memory_space<vmem>>, %arg4: memref<1x128xf32, #tpu.memory_space<vmem>>, %arg5: memref<200x128xf32, #tpu.memory_space<vmem>>) attributes {dimension_semantics = [#tpu.dimension_semantics<parallel>, #tpu.dimension_semantics<parallel>], iteration_bounds = array<i64: 2, 1>, scalar_prefetch = 0 : i64, scratch_operands = 0 : i64, tpu.core_type = #tpu.core_type<tc>, window_params = [{transform_indices = @transform_0, window_bounds = array<i64: 200, 40>}, {transform_indices = @transform_1, window_bounds = array<i64: 40, 128>}, {transform_indices = @transform_2, window_bounds = array<i64: 1, 128>}, {transform_indices = @transform_3, window_bounds = array<i64: 200, 128>}]} {
    %c0 = arith.constant 0 : index
    %c0_0 = arith.constant 0 : index
    %0 = vector.load %arg2[%c0, %c0_0] : memref<200x40xf32, #tpu.memory_space<vmem>>, vector<200x40xf32>
    %c0_1 = arith.constant 0 : index
    %c0_2 = arith.constant 0 : index
    %1 = vector.load %arg3[%c0_1, %c0_2] : memref<40x128xf32, #tpu.memory_space<vmem>>, vector<40x128xf32>
    %cst = arith.constant dense<0.000000e+00> : vector<200x128xf32>
    %2 = tpu.matmul %0, %1, %cst {dimension_numbers = #tpu.dot_dimension_numbers<[1], [0], [0], [1], [0, 0, 1, 1], [], []>} : vector<200x40xf32>, vector<40x128xf32>, vector<200x128xf32> -> vector<200x128xf32>
    %c0_3 = arith.constant 0 : index
    %c0_4 = arith.constant 0 : index
    %3 = vector.load %arg4[%c0_3, %c0_4] : memref<1x128xf32, #tpu.memory_space<vmem>>, vector<1x128xf32>
    %4 = vector.broadcast %3 : vector<1x128xf32> to vector<200x128xf32>
    %5 = arith.addf %2, %4 : vector<200x128xf32>
    %cst_5 = arith.constant 0.000000e+00 : f32
    %6 = vector.broadcast %cst_5 : f32 to vector<200x128xf32>
    %7 = arith.maximumf %5, %6 : vector<200x128xf32>
    %c0_6 = arith.constant 0 : index
    %c0_7 = arith.constant 0 : index
    %8 = vector.load %arg5[%c0_6, %c0_7] : memref<200x128xf32, #tpu.memory_space<vmem>>, vector<200x128xf32>
    tpu.vector_store %arg5[%c0_6, %c0_7], %7 {strides = array<i32>} : memref<200x128xf32, #tpu.memory_space<vmem>>, vector<200x128xf32>,
    return
  }
  func.func @transform_0(%arg0: i32, %arg1: i32) -> (i32, i32) {
    %c0_i32 = arith.constant 0 : i32
    %c0_i32_0 = arith.constant 0 : i32
    return %arg0, %c0_i32 : i32, i32
  }
  func.func @transform_1(%arg0: i32, %arg1: i32) -> (i32, i32) {
    %c0_i32 = arith.constant 0 : i32
    %c0_i32_0 = arith.constant 0 : i32
    return %c0_i32, %arg1 : i32, i32
  }
  func.func @transform_2(%arg0: i32, %arg1: i32) -> (i32, i32) {
    %c0_i32 = arith.constant 0 : i32
    %c0_i32_0 = arith.constant 0 : i32
    return %c0_i32, %arg1 : i32, i32
  }
  func.func @transform_3(%arg0: i32, %arg1: i32) -> (i32, i32) {
    %c0_i32 = arith.constant 0 : i32
    return %arg0, %arg1 : i32, i32
  }
}

</mosaic_0001>

<llo_original>
// kernel: tpu_custom_call.1
$region0: #{tpu_custom_call.1}
  #allocation0 [shape = 'u32[]', space=smem, size = 0x4, offset = 0x4, fixed_abs, tag = 'smem constant byte address 0x4 - core index']
  #allocation1 [shape = 'u32[144,128]{1,0:T(1,128)}', space=vmem, size = 0x12000, scoped, tag = 'internal scratch']
  %s0 = inlined_call_operand.vmem [shape: f32[400,40], index: 0, kind: input, shape index: {}]
  %s1 = inlined_call_operand.vmem [shape: f32[40,128], index: 1, kind: input, shape index: {}]
  %s2 = inlined_call_operand.vmem [shape: f32[1,128], index: 2, kind: input, shape index: {}]
  %s3 = inlined_call_operand.hbm [shape: f32[400,128], index: 3, kind: output, shape index: {}]
  %s4 = sld [smem:[#allocation0]]
  $region45: #{tpu_custom_call.1} parent=0
    _
  %s6 = ssub.s32 1, %s4
  %s7 = scalar_select 0, %s6, %s4
  $region1: #{tpu_custom_call.1} parent=0
    #allocation2 [shape = 'u8[204800]{0}', space=vmem, size = 0x32000, scoped, tag = 'output window, operand 0']
    #allocation3 [shape = 's32[2]{0}', space=sflag, size = 0x8, scoped, tag = 'scoped memory for tpu_custom_call.1']
    %8 = vsyncpa [#allocation3], 0
    %s9 = scalar_lea.sflag [#allocation3], 1
    %10 = vsyncpa %s9, 0
    loop: start=0, step=1, limit=4
    $region2: #{tpu_custom_call.1} parent=1 // loop_pre_header
      _
    $region3: #{tpu_custom_call.1} parent=1 // loop_header
      %s12 = sphi 0, %s16
      %p13 = scmp.ge.s32.totalorder %s12, 4
      %s19 = sphi 0, %s31
      %s20 = sphi 0, %s27
      %s21 = sphi 0, %s19
      %s22 = sphi 0, %s20
      %s23 = sphi 0, %s21
      %s24 = sphi 0, %s22
      %s34 = sphi 0, %s36
      %s37 = sphi 0, %s34
      %s38 = sphi 0, %s37
      %s54 = sphi 0, %s38
      %s60 = sphi 0, %s62
      %s63 = sphi 0, %s60
      %s64 = sphi 0, %s63
      %s80 = sphi 0, %s64
      %s86 = sphi 0, %s88
      %s89 = sphi 0, %s86
      %s90 = sphi 0, %s89
      %s106 = sphi 0, %s90
      %s114 = sphi 0, %s116
      %s117 = sphi 0, %s114
      %s118 = sphi 0, %s117
      %s134 = sphi 0, %s118
    $region4: #{tpu_custom_call.1} parent=1 // loop_header_branch
      %15 = sbr.rel (%p13) target = $region8
    $region5: #{tpu_custom_call.1} parent=1 // loop_body
      %s17 = ssub.s32 %s12, 1
      %s18 = ssub.s32 %s12, 2
      %s25 = sadd.s32 1, %s20
      %p26 = scmp.ge.s32.totalorder %s25, 1
      %s27 = scalar_select %p26, 0, %s25
      %s28 = sadd.s32 1, %s19
      %s29 = scalar_select %p26, %s28, %s19
      %p30 = scmp.ge.s32.totalorder %s29, 2
      %s31 = scalar_select %p30, 0, %s29
      %s32 = ssub.s32 %s19, %s31
      %p33 = scmp.eq.s32.totalorder %s32, 0
      %s35 = sadd.s32 %s34, 1
      %s36 = scalar_select %p33, %s34, %s35
      %p39 = pneg %p33
      %p40 = scmp.eq.s32.totalorder %s12, 1
      %p41 = por %p39, %p40
      %p42 = scmp.ne.s32.totalorder %s34, %s37
      %p43 = scmp.eq.s32.totalorder %s12, 0
      %p44 = por %p42, %p43
      %p45 = scmp.ne.s32.totalorder %s34, %s37
      %p46 = scmp.eq.s32.totalorder %s17, 1
      %p47 = por %p45, %p46
      %p48 = scmp.ne.s32.totalorder %s37, %s38
      %p49 = scmp.eq.s32.totalorder %s17, 0
      %p50 = por %p48, %p49
      %p51 = scmp.ne.s32.totalorder %s37, %s38
      %p52 = scmp.eq.s32.totalorder %s18, 1
      %p53 = por %p51, %p52
      %p55 = scmp.ne.s32.totalorder %s38, %s54
      %p56 = scmp.eq.s32.totalorder %s18, 0
      %p57 = por %p55, %p56
      %s58 = ssub.s32 %s20, %s27
      %p59 = scmp.eq.s32.totalorder %s58, 0
      %s61 = sadd.s32 %s60, 1
      %s62 = scalar_select %p59, %s60, %s61
      %p65 = pneg %p59
      %p66 = scmp.eq.s32.totalorder %s12, 1
      %p67 = por %p65, %p66
      %p68 = scmp.ne.s32.totalorder %s60, %s63
      %p69 = scmp.eq.s32.totalorder %s12, 0
      %p70 = por %p68, %p69
      %p71 = scmp.ne.s32.totalorder %s60, %s63
      %p72 = scmp.eq.s32.totalorder %s17, 1
      %p73 = por %p71, %p72
      %p74 = scmp.ne.s32.totalorder %s63, %s64
      %p75 = scmp.eq.s32.totalorder %s17, 0
      %p76 = por %p74, %p75
      %p77 = scmp.ne.s32.totalorder %s63, %s64
      %p78 = scmp.eq.s32.totalorder %s18, 1
      %p79 = por %p77, %p78
      %p81 = scmp.ne.s32.totalorder %s64, %s80
      %p82 = scmp.eq.s32.totalorder %s18, 0
      %p83 = por %p81, %p82
      %s84 = ssub.s32 %s20, %s27
      %p85 = scmp.eq.s32.totalorder %s84, 0
      %s87 = sadd.s32 %s86, 1
      %s88 = scalar_select %p85, %s86, %s87
      %p91 = pneg %p85
      %p92 = scmp.eq.s32.totalorder %s12, 1
      %p93 = por %p91, %p92
      %p94 = scmp.ne.s32.totalorder %s86, %s89
      %p95 = scmp.eq.s32.totalorder %s12, 0
      %p96 = por %p94, %p95
      %p97 = scmp.ne.s32.totalorder %s86, %s89
      %p98 = scmp.eq.s32.totalorder %s17, 1
      %p99 = por %p97, %p98
      %p100 = scmp.ne.s32.totalorder %s89, %s90
      %p101 = scmp.eq.s32.totalorder %s17, 0
      %p102 = por %p100, %p101
      %p103 = scmp.ne.s32.totalorder %s89, %s90
      %p104 = scmp.eq.s32.totalorder %s18, 1
      %p105 = por %p103, %p104
      %p107 = scmp.ne.s32.totalorder %s90, %s106
      %p108 = scmp.eq.s32.totalorder %s18, 0
      %p109 = por %p107, %p108
      %s110 = ssub.s32 %s19, %s31
      %s111 = ssub.s32 %s20, %s27
      %s112 = sor.u32 %s110, %s111
      %p113 = scmp.eq.s32.totalorder %s112, 0
      %s115 = sadd.s32 %s114, 1
      %s116 = scalar_select %p113, %s114, %s115
      %p119 = pneg %p113
      %p120 = scmp.eq.s32.totalorder %s12, 1
      %p121 = por %p119, %p120
      %p122 = scmp.ne.s32.totalorder %s114, %s117
      %p123 = scmp.eq.s32.totalorder %s12, 0
      %p124 = por %p122, %p123
      %p125 = scmp.ne.s32.totalorder %s114, %s117
      %p126 = scmp.eq.s32.totalorder %s17, 1
      %p127 = por %p125, %p126
      %p128 = scmp.ne.s32.totalorder %s117, %s118
      %p129 = scmp.eq.s32.totalorder %s17, 0
      %p130 = por %p128, %p129
      %p131 = scmp.ne.s32.totalorder %s117, %s118
      %p132 = scmp.eq.s32.totalorder %s18, 1
      %p133 = por %p131, %p132
      %p135 = scmp.ne.s32.totalorder %s118, %s134
      %p136 = scmp.eq.s32.totalorder %s18, 0
      %p137 = por %p135, %p136
      %p138 = scmp.le.s32.totalorder 1, %s12
      %p139 = scmp.lt.s32.totalorder %s12, 3
      %p140 = pnand %p138, %p139
      %p141 = pneg %p140
      // Predicated region
      $region9: #{tpu_custom_call.1} parent=5 // pred_check
        _
      $region10: #{tpu_custom_call.1} parent=5 // pred_check_branch
        %143 = sbr.rel (%p140) target = $region12
      $region11: #{tpu_custom_call.1} parent=5 // pred_region
        %s144 = ssub.s32 %s12, 1
        // Predicated region
        $region13: #{tpu_custom_call.1} parent=11 // pred_check
          %p145 = pneg %p76
        $region14: #{tpu_custom_call.1} parent=11 // pred_check_branch
          %147 = sbr.rel (%p145) target = $region16
        $region15: #{tpu_custom_call.1} parent=11 // pred_region
          %p148 = scmp.lt.s32.totalorder %s22, 0
          %s149 = scalar_select %p148, %s22, 0
          %s150 = smul.addr %s149, 8
          %s151 = scalar_lea.vmem %s1, %s150
        $region16: #{tpu_custom_call.1} parent=11 // pred_fallthru
          _
        // Predicated region
        $region17: #{tpu_custom_call.1} parent=11 // pred_check
          %p152 = pneg %p102
        $region18: #{tpu_custom_call.1} parent=11 // pred_check_branch
          %154 = sbr.rel (%p152) target = $region20
        $region19: #{tpu_custom_call.1} parent=11 // pred_region
          %p155 = scmp.lt.s32.totalorder %s22, 0
          %s156 = scalar_select %p155, %s22, 0
          %s157 = scalar_lea.vmem %s2, %s156
        $region20: #{tpu_custom_call.1} parent=11 // pred_fallthru
          _
      $region12: #{tpu_custom_call.1} parent=5 // pred_fallthru
        _
      %p158 = scmp.lt.s32.totalorder %s12, 2
      // Predicated region
      $region21: #{tpu_custom_call.1} parent=5 // pred_check
        %p159 = pneg %p158
      $region22: #{tpu_custom_call.1} parent=5 // pred_check_branch
        %161 = sbr.rel (%p159) target = $region24
      $region23: #{tpu_custom_call.1} parent=5 // pred_region
        // Predicated region
        $region25: #{tpu_custom_call.1} parent=23 // pred_check
          %p162 = pneg %p44
        $region26: #{tpu_custom_call.1} parent=23 // pred_check_branch
          %164 = sbr.rel (%p162) target = $region28
        $region27: #{tpu_custom_call.1} parent=23 // pred_region
          %s165 = smul.u32 25, %s19
          %p166 = scmp.lt.s32.totalorder %s165, 49
          %s167 = scalar_select %p166, %s165, 49
          %s168 = smul.addr %s167, 8
          %s169 = scalar_lea.vmem %s0, %s168
          %s170 = smul.u32 25, %s19
        $region28: #{tpu_custom_call.1} parent=23 // pred_fallthru
          _
      $region24: #{tpu_custom_call.1} parent=5 // pred_fallthru
        _
      %p171 = scmp.le.s32.totalorder 1, %s12
      %p172 = scmp.lt.s32.totalorder %s12, 3
      %p173 = pnand %p171, %p172
      %p174 = pneg %p173
      // Predicated region
      $region29: #{tpu_custom_call.1} parent=5 // pred_check
        _
      $region30: #{tpu_custom_call.1} parent=5 // pred_check_branch
        %176 = sbr.rel (%p173) target = $region32
      $region31: #{tpu_custom_call.1} parent=5 // pred_region
        %s177 = ssub.s32 %s12, 1
        %s178 = smul.u32 25, %s21
        %p179 = scmp.lt.s32.totalorder %s178, 49
        %s180 = scalar_select %p179, %s178, 49
        %s181 = smul.addr %s180, 8
        %s182 = scalar_lea.vmem %s0, %s181
        %p183 = pneg %p50
        %p184 = pneg %p47
        %p185 = scmp.lt.s32.totalorder %s22, 0
        %s186 = scalar_select %p185, %s22, 0
        %s187 = smul.addr %s186, 8
        %s188 = scalar_lea.vmem %s1, %s187
        %p189 = pneg %p76
        %p190 = pneg %p73
        %p191 = scmp.lt.s32.totalorder %s22, 0
        %s192 = scalar_select %p191, %s22, 0
        %s193 = scalar_lea.vmem %s2, %s192
        %p194 = pneg %p102
        %p195 = pneg %p99
        %p196 = pneg %p130
        %p197 = pneg %p127
        %s198 = sand.u32 %s117, 1
        %s199 = scalar_lea.sflag [#allocation3], %s198
        %s200 = sand.u32 %s117, 1
        %s201 = smul.addr %s200, 200
        %s202 = scalar_lea.vmem [#allocation2], %s201
        %s203 = smul.u32 25, %s21
        %p204 = scmp.lt.s32.totalorder %s203, 49
        %s205 = scalar_select %p204, %s203, 49
        %s206 = smul.addr %s205, 8
        %s207 = scalar_lea.vmem %s0, %s206
        %s208 = smul.u32 25, %s21
        %p209 = scmp.lt.s32.totalorder %s22, 0
        %s210 = scalar_select %p209, %s22, 0
        %s211 = smul.addr %s210, 8
        %s212 = scalar_lea.vmem %s1, %s211
        %p213 = scmp.lt.s32.totalorder %s22, 0
        %s214 = scalar_select %p213, %s22, 0
        %s215 = scalar_lea.vmem %s2, %s214
        %s216 = smul.u32 25, %s21
        %v217 = vld [vmem:[%s207] sm:$0xff]
        %v218 = vld [vmem:[%s207 + $0x8] sm:$0xff]
        %v219 = vld [vmem:[%s207 + $0x10] sm:$0xff]
        %v220 = vld [vmem:[%s207 + $0x18] sm:$0xff]
        %v221 = vld [vmem:[%s207 + $0x20] sm:$0xff]
        %v222 = vld [vmem:[%s207 + $0x28] sm:$0xff]
        %v223 = vld [vmem:[%s207 + $0x30] sm:$0xff]
        %v224 = vld [vmem:[%s207 + $0x38] sm:$0xff]
        %v225 = vld [vmem:[%s207 + $0x40] sm:$0xff]
        %v226 = vld [vmem:[%s207 + $0x48] sm:$0xff]
        %v227 = vld [vmem:[%s207 + $0x50] sm:$0xff]
        %v228 = vld [vmem:[%s207 + $0x58] sm:$0xff]
        %v229 = vld [vmem:[%s207 + $0x60] sm:$0xff]
        %v230 = vld [vmem:[%s207 + $0x68] sm:$0xff]
        %v231 = vld [vmem:[%s207 + $0x70] sm:$0xff]
        %v232 = vld [vmem:[%s207 + $0x78] sm:$0xff]
        %v233 = vld [vmem:[%s207 + $0x80] sm:$0xff]
        %v234 = vld [vmem:[%s207 + $0x88] sm:$0xff]
        %v235 = vld [vmem:[%s207 + $0x90] sm:$0xff]
        %v236 = vld [vmem:[%s207 + $0x98] sm:$0xff]
        %v237 = vld [vmem:[%s207 + $0xa0] sm:$0xff]
        %v238 = vld [vmem:[%s207 + $0xa8] sm:$0xff]
        %v239 = vld [vmem:[%s207 + $0xb0] sm:$0xff]
        %v240 = vld [vmem:[%s207 + $0xb8] sm:$0xff]
        %v241 = vld [vmem:[%s207 + $0xc0] sm:$0xff]
        %v242 = vld [vmem:[%s212] sm:$0xff]
        %v243 = vld [vmem:[%s212 + $0x8] sm:$0xff]
        %v244 = vld [vmem:[%s212 + $0x10] sm:$0xff]
        %v245 = vld [vmem:[%s212 + $0x18] sm:$0xff]
        %v246 = vld [vmem:[%s212 + $0x20] sm:$0xff]
        %v247 = vld [vmem:[%s215] sm:$0x1]
        %v249 = vlaneseq
        %v250 = vshrl.u32 %v249, 7
        %v251 = vsub.s32 0, %v250
        %v252 = vrot.slane %v247, %v251
        %vm254 = vcmask 326656
        %v256 = vsel %vm254, %v217, 0
        %v259 = vsel %vm254, %v218, 0
        %v262 = vsel %vm254, %v219, 0
        %v265 = vsel %vm254, %v220, 0
        %v268 = vsel %vm254, %v221, 0
        %v271 = vsel %vm254, %v222, 0
        %v274 = vsel %vm254, %v223, 0
        %v277 = vsel %vm254, %v224, 0
        %v280 = vsel %vm254, %v225, 0
        %v283 = vsel %vm254, %v226, 0
        %v286 = vsel %vm254, %v227, 0
        %v289 = vsel %vm254, %v228, 0
        %v292 = vsel %vm254, %v229, 0
        %v295 = vsel %vm254, %v230, 0
        %v298 = vsel %vm254, %v231, 0
        %v301 = vsel %vm254, %v232, 0
        %v304 = vsel %vm254, %v233, 0
        %v307 = vsel %vm254, %v234, 0
        %v310 = vsel %vm254, %v235, 0
        %v313 = vsel %vm254, %v236, 0
        %v316 = vsel %vm254, %v237, 0
        %v319 = vsel %vm254, %v238, 0
        %v322 = vsel %vm254, %v239, 0
        %v325 = vsel %vm254, %v240, 0
        %v328 = vsel %vm254, %v241, 0
        %330 = vmatprep.subr.mxu0 0.0
        %331 = vmatpush1.msra.mxu0 %v242
        %332 = vmatprep.subr.mxu0 0.0
        %333 = vmatpush1.msra.mxu0 %v243
        %334 = vmatprep.subr.mxu0 0.0
        %335 = vmatpush1.msra.mxu0 %v244
        %336 = vmatprep.subr.mxu0 0.0
        %337 = vmatpush1.msra.mxu0 %v245
        %338 = vmatprep.subr.mxu0 0.0
        %339 = vmatpush1.msra.mxu0 %v246
        %340 = vmatprep.subr.mxu0 0.0
        %341 = vmatpush1.msra.mxu0 0.0
        %342 = vmatprep.subr.mxu0 0.0
        %343 = vmatpush1.msra.mxu0 0.0
        %344 = vmatprep.subr.mxu0 0.0
        %345 = vmatpush1.msra.mxu0 0.0
        %346 = vmatprep.subr.mxu0 0.0
        %347 = vmatpush1.msra.mxu0 0.0
        %348 = vmatprep.subr.mxu0 0.0
        %349 = vmatpush1.msra.mxu0 0.0
        %350 = vmatprep.subr.mxu0 0.0
        %351 = vmatpush1.msra.mxu0 0.0
        %352 = vmatprep.subr.mxu0 0.0
        %353 = vmatpush1.msra.mxu0 0.0
        %354 = vmatprep.subr.mxu0 0.0
        %355 = vmatpush1.msra.mxu0 0.0
        %356 = vmatprep.subr.mxu0 0.0
        %357 = vmatpush1.msra.mxu0 0.0
        %358 = vmatprep.subr.mxu0 0.0
        %359 = vmatpush1.msra.mxu0 0.0
        %360 = vmatprep.subr.mxu0 0.0
        %361 = vmatpush1.msra.mxu0 0.0
        %362 = vmatprep.subr.mxu0 0.0
        %363 = vmatpush1.msra.mxu0 0.0
        %364 = vmatprep.subr.mxu0 0.0
        %365 = vmatpush1.msra.mxu0 0.0
        %366 = vmatprep.subr.mxu0 0.0
        %367 = vmatpush1.msra.mxu0 0.0
        %368 = vmatprep.subr.mxu0 0.0
        %369 = vmatpush1.msra.mxu0 0.0
        %370 = vmatprep.subr.mxu0 0.0
        %371 = vmatpush1.msra.mxu0 0.0
        %372 = vmatprep.subr.mxu0 0.0
        %373 = vmatpush1.msra.mxu0 0.0
        %374 = vmatprep.subr.mxu0 0.0
        %375 = vmatpush1.msra.mxu0 0.0
        %376 = vmatprep.subr.mxu0 0.0
        %377 = vmatpush1.msra.mxu0 0.0
        %378 = vmatprep.subr.mxu0 0.0
        %379 = vmatpush1.msra.mxu0 0.0
        %380 = vmatprep.subr.mxu0 0.0
        %381 = vmatpush1.msra.mxu0 0.0
        %382 = vmatprep.subr.mxu0 0.0
        %383 = vmatpush1.msra.mxu0 0.0
        %384 = vmatprep.subr.mxu0 0.0
        %385 = vmatpush1.msra.mxu0 0.0
        %386 = vmatprep.subr.mxu0 0.0
        %387 = vmatpush1.msra.mxu0 0.0
        %388 = vmatprep.subr.mxu0 0.0
        %389 = vmatpush1.msra.mxu0 0.0
        %390 = vmatprep.subr.mxu0 0.0
        %391 = vmatpush1.msra.mxu0 0.0
        %392 = vmatprep.subr.mxu0 0.0
        %393 = vmatpush1.msra.mxu0 0.0
        %394 = vmatprep.mubr.f32.mxu0 0.0
        %395 = vmatmul.mubr.f32.gmra.mrb[0].mxu0 %v256
        %v396 = vpop.f32.mrb[0].mxu0
        %v397 = vadd.f32 %v252, %v396
        %v398 = vpop.f32.mrb[0].mxu0
        %399 = vmatprep.mubr.f32.mxu0 0.0
        %400 = vmatmul.mubr.f32.gmra.mrb[0].mxu0 %v259
        %v401 = vpop.f32.mrb[0].mxu0
        %v402 = vadd.f32 %v252, %v401
        %v403 = vpop.f32.mrb[0].mxu0
        %404 = vmatprep.mubr.f32.mxu0 0.0
        %405 = vmatmul.mubr.f32.gmra.mrb[0].mxu0 %v262
        %v406 = vpop.f32.mrb[0].mxu0
        %v407 = vadd.f32 %v252, %v406
        %v408 = vpop.f32.mrb[0].mxu0
        %409 = vmatprep.mubr.f32.mxu0 0.0
        %410 = vmatmul.mubr.f32.gmra.mrb[0].mxu0 %v265
        %v411 = vpop.f32.mrb[0].mxu0
        %v412 = vadd.f32 %v252, %v411
        %v413 = vpop.f32.mrb[0].mxu0
        %414 = vmatprep.mubr.f32.mxu0 0.0
        %415 = vmatmul.mubr.f32.gmra.mrb[0].mxu0 %v268
        %v416 = vpop.f32.mrb[0].mxu0
        %v417 = vadd.f32 %v252, %v416
        %v418 = vpop.f32.mrb[0].mxu0
        %419 = vmatprep.mubr.f32.mxu0 0.0
        %420 = vmatmul.mubr.f32.gmra.mrb[0].mxu0 %v271
        %v421 = vpop.f32.mrb[0].mxu0
        %v422 = vadd.f32 %v252, %v421
        %v423 = vpop.f32.mrb[0].mxu0
        %424 = vmatprep.mubr.f32.mxu0 0.0
        %425 = vmatmul.mubr.f32.gmra.mrb[0].mxu0 %v274
        %v426 = vpop.f32.mrb[0].mxu0
        %v427 = vadd.f32 %v252, %v426
        %v428 = vpop.f32.mrb[0].mxu0
        %429 = vmatprep.mubr.f32.mxu0 0.0
        %430 = vmatmul.mubr.f32.gmra.mrb[0].mxu0 %v277
        %v431 = vpop.f32.mrb[0].mxu0
        %v432 = vadd.f32 %v252, %v431
        %v433 = vpop.f32.mrb[0].mxu0
        %434 = vmatprep.mubr.f32.mxu0 0.0
        %435 = vmatmul.mubr.f32.gmra.mrb[0].mxu0 %v280
        %v436 = vpop.f32.mrb[0].mxu0
        %v437 = vadd.f32 %v252, %v436
        %v438 = vpop.f32.mrb[0].mxu0
        %439 = vmatprep.mubr.f32.mxu0 0.0
        %440 = vmatmul.mubr.f32.gmra.mrb[0].mxu0 %v283
        %v441 = vpop.f32.mrb[0].mxu0
        %v442 = vadd.f32 %v252, %v441
        %v443 = vpop.f32.mrb[0].mxu0
        %444 = vmatprep.mubr.f32.mxu0 0.0
        %445 = vmatmul.mubr.f32.gmra.mrb[0].mxu0 %v286
        %v446 = vpop.f32.mrb[0].mxu0
        %v447 = vadd.f32 %v252, %v446
        %v448 = vpop.f32.mrb[0].mxu0
        %449 = vmatprep.mubr.f32.mxu0 0.0
        %450 = vmatmul.mubr.f32.gmra.mrb[0].mxu0 %v289
        %v451 = vpop.f32.mrb[0].mxu0
        %v452 = vadd.f32 %v252, %v451
        %v453 = vpop.f32.mrb[0].mxu0
        %454 = vmatprep.mubr.f32.mxu0 0.0
        %455 = vmatmul.mubr.f32.gmra.mrb[0].mxu0 %v292
        %v456 = vpop.f32.mrb[0].mxu0
        %v457 = vadd.f32 %v252, %v456
        %v458 = vpop.f32.mrb[0].mxu0
        %459 = vmatprep.mubr.f32.mxu0 0.0
        %460 = vmatmul.mubr.f32.gmra.mrb[0].mxu0 %v295
        %v461 = vpop.f32.mrb[0].mxu0
        %v462 = vadd.f32 %v252, %v461
        %v463 = vpop.f32.mrb[0].mxu0
        %464 = vmatprep.mubr.f32.mxu0 0.0
        %465 = vmatmul.mubr.f32.gmra.mrb[0].mxu0 %v298
        %v466 = vpop.f32.mrb[0].mxu0
        %v467 = vadd.f32 %v252, %v466
        %v468 = vpop.f32.mrb[0].mxu0
        %469 = vmatprep.mubr.f32.mxu0 0.0
        %470 = vmatmul.mubr.f32.gmra.mrb[0].mxu0 %v301
        %v471 = vpop.f32.mrb[0].mxu0
        %v472 = vadd.f32 %v252, %v471
        %v473 = vpop.f32.mrb[0].mxu0
        %474 = vmatprep.mubr.f32.mxu0 0.0
        %475 = vmatmul.mubr.f32.gmra.mrb[0].mxu0 %v304
        %v476 = vpop.f32.mrb[0].mxu0
        %v477 = vadd.f32 %v252, %v476
        %v478 = vpop.f32.mrb[0].mxu0
        %479 = vmatprep.mubr.f32.mxu0 0.0
        %480 = vmatmul.mubr.f32.gmra.mrb[0].mxu0 %v307
        %v481 = vpop.f32.mrb[0].mxu0
        %v482 = vadd.f32 %v252, %v481
        %v483 = vpop.f32.mrb[0].mxu0
        %484 = vmatprep.mubr.f32.mxu0 0.0
        %485 = vmatmul.mubr.f32.gmra.mrb[0].mxu0 %v310
        %v486 = vpop.f32.mrb[0].mxu0
        %v487 = vadd.f32 %v252, %v486
        %v488 = vpop.f32.mrb[0].mxu0
        %489 = vmatprep.mubr.f32.mxu0 0.0
        %490 = vmatmul.mubr.f32.gmra.mrb[0].mxu0 %v313
        %v491 = vpop.f32.mrb[0].mxu0
        %v492 = vadd.f32 %v252, %v491
        %v493 = vpop.f32.mrb[0].mxu0
        %494 = vmatprep.mubr.f32.mxu0 0.0
        %495 = vmatmul.mubr.f32.gmra.mrb[0].mxu0 %v316
        %v496 = vpop.f32.mrb[0].mxu0
        %v497 = vadd.f32 %v252, %v496
        %v498 = vpop.f32.mrb[0].mxu0
        %499 = vmatprep.mubr.f32.mxu0 0.0
        %500 = vmatmul.mubr.f32.gmra.mrb[0].mxu0 %v319
        %v501 = vpop.f32.mrb[0].mxu0
        %v502 = vadd.f32 %v252, %v501
        %v503 = vpop.f32.mrb[0].mxu0
        %504 = vmatprep.mubr.f32.mxu0 0.0
        %505 = vmatmul.mubr.f32.gmra.mrb[0].mxu0 %v322
        %v506 = vpop.f32.mrb[0].mxu0
        %v507 = vadd.f32 %v252, %v506
        %v508 = vpop.f32.mrb[0].mxu0
        %509 = vmatprep.mubr.f32.mxu0 0.0
        %510 = vmatmul.mubr.f32.gmra.mrb[0].mxu0 %v325
        %v511 = vpop.f32.mrb[0].mxu0
        %v512 = vadd.f32 %v252, %v511
        %v513 = vpop.f32.mrb[0].mxu0
        %514 = vmatprep.mubr.f32.mxu0 0.0
        %515 = vmatmul.mubr.f32.gmra.mrb[0].mxu0 %v328
        %v516 = vpop.f32.mrb[0].mxu0
        %v517 = vadd.f32 %v252, %v516
        %v518 = vpop.f32.mrb[0].mxu0
        %519 = vdwg.mxu0
        %v520 = vmax.f32 %v397, 0.0
        %v521 = vmax.f32 %v402, 0.0
        %v522 = vmax.f32 %v407, 0.0
        %v523 = vmax.f32 %v412, 0.0
        %v524 = vmax.f32 %v417, 0.0
        %v525 = vmax.f32 %v422, 0.0
        %v526 = vmax.f32 %v427, 0.0
        %v527 = vmax.f32 %v432, 0.0
        %v528 = vmax.f32 %v437, 0.0
        %v529 = vmax.f32 %v442, 0.0
        %v530 = vmax.f32 %v447, 0.0
        %v531 = vmax.f32 %v452, 0.0
        %v532 = vmax.f32 %v457, 0.0
        %v533 = vmax.f32 %v462, 0.0
        %v534 = vmax.f32 %v467, 0.0
        %v535 = vmax.f32 %v472, 0.0
        %v536 = vmax.f32 %v477, 0.0
        %v537 = vmax.f32 %v482, 0.0
        %v538 = vmax.f32 %v487, 0.0
        %v539 = vmax.f32 %v492, 0.0
        %v540 = vmax.f32 %v497, 0.0
        %v541 = vmax.f32 %v502, 0.0
        %v542 = vmax.f32 %v507, 0.0
        %v543 = vmax.f32 %v512, 0.0
        %v544 = vmax.f32 %v517, 0.0
        %545 = vst [vmem:[%s202] sm:$0xff] %v520
        %546 = vst [vmem:[%s202 + $0x8] sm:$0xff] %v521
        %547 = vst [vmem:[%s202 + $0x10] sm:$0xff] %v522
        %548 = vst [vmem:[%s202 + $0x18] sm:$0xff] %v523
        %549 = vst [vmem:[%s202 + $0x20] sm:$0xff] %v524
        %550 = vst [vmem:[%s202 + $0x28] sm:$0xff] %v525
        %551 = vst [vmem:[%s202 + $0x30] sm:$0xff] %v526
        %552 = vst [vmem:[%s202 + $0x38] sm:$0xff] %v527
        %553 = vst [vmem:[%s202 + $0x40] sm:$0xff] %v528
        %554 = vst [vmem:[%s202 + $0x48] sm:$0xff] %v529
        %555 = vst [vmem:[%s202 + $0x50] sm:$0xff] %v530
        %556 = vst [vmem:[%s202 + $0x58] sm:$0xff] %v531
        %557 = vst [vmem:[%s202 + $0x60] sm:$0xff] %v532
        %558 = vst [vmem:[%s202 + $0x68] sm:$0xff] %v533
        %559 = vst [vmem:[%s202 + $0x70] sm:$0xff] %v534
        %560 = vst [vmem:[%s202 + $0x78] sm:$0xff] %v535
        %561 = vst [vmem:[%s202 + $0x80] sm:$0xff] %v536
        %562 = vst [vmem:[%s202 + $0x88] sm:$0xff] %v537
        %563 = vst [vmem:[%s202 + $0x90] sm:$0xff] %v538
        %564 = vst [vmem:[%s202 + $0x98] sm:$0xff] %v539
        %565 = vst [vmem:[%s202 + $0xa0] sm:$0xff] %v540
        %566 = vst [vmem:[%s202 + $0xa8] sm:$0xff] %v541
        %567 = vst [vmem:[%s202 + $0xb0] sm:$0xff] %v542
        %568 = vst [vmem:[%s202 + $0xb8] sm:$0xff] %v543
        %569 = vst [vmem:[%s202 + $0xc0] sm:$0xff] %v544
        %s570 = sand.u32 %s117, 1
        %s571 = scalar_lea.sflag [#allocation3], %s570
        %s572 = sand.u32 %s117, 1
        %s573 = smul.addr %s572, 200
        %s574 = scalar_lea.vmem [#allocation2], %s573
        // Predicated region
        $region33: #{tpu_custom_call.1} parent=31 // pred_check
          %p575 = pneg %p127
        $region34: #{tpu_custom_call.1} parent=31 // pred_check_branch
          %577 = sbr.rel (%p575) target = $region36
        $region35: #{tpu_custom_call.1} parent=31 // pred_region
          %s578 = smul.u32 25, %s21
          %s580 = ssub.s32 3200, 3200
          %581 = vsyncadd %s571, %s580
          %s582 = sadd.s32 %s22, %s578
          %s583 = smul.addr %s582, 128
          %s584 = scalar_lea.hbm %s3, %s583
          %s585 = sshll.u32 %s574, 4
          %s586 = int_to_ptr.vmem [resolvable:$true] %s585
          %591 = dma.vmem_to_hbm [thread:$0]  %s586, 3200, %s584, %s571, 128, 128, 8
        $region36: #{tpu_custom_call.1} parent=31 // pred_fallthru
          _
      $region32: #{tpu_custom_call.1} parent=5 // pred_fallthru
        _
      %p592 = scmp.le.s32.totalorder 2, %s12
      // Predicated region
      $region37: #{tpu_custom_call.1} parent=5 // pred_check
        %p593 = pneg %p592
      $region38: #{tpu_custom_call.1} parent=5 // pred_check_branch
        %595 = sbr.rel (%p593) target = $region40
      $region39: #{tpu_custom_call.1} parent=5 // pred_region
        %s596 = ssub.s32 %s12, 2
        // Predicated region
        $region41: #{tpu_custom_call.1} parent=39 // pred_check
          %p597 = pneg %p133
        $region42: #{tpu_custom_call.1} parent=39 // pred_check_branch
          %599 = sbr.rel (%p597) target = $region44
        $region43: #{tpu_custom_call.1} parent=39 // pred_region
          %s600 = sand.u32 %s118, 1
          %s601 = scalar_lea.sflag [#allocation3], %s600
          %s602 = sand.u32 %s118, 1
          %s603 = smul.addr %s602, 200
          %s604 = scalar_lea.vmem [#allocation2], %s603
          %605 = dma.done %s601, 3200
        $region44: #{tpu_custom_call.1} parent=39 // pred_fallthru
          _
      $region40: #{tpu_custom_call.1} parent=5 // pred_fallthru
        _
    $region6: #{tpu_custom_call.1} parent=1 // loop_footer
      %s16 = sadd.s32 1, %s12
    $region7: #{tpu_custom_call.1} parent=1 // loop_footer_branch
      %11 = sbr.rel target = $region3
    $region8: #{tpu_custom_call.1} parent=1 // loop_exit
      _
    %606 = vsyncpa [#allocation3], 1
    %s607 = scalar_lea.sflag [#allocation3], 1
    %608 = vsyncpa %s607, 1

</llo_original>
